<compile_context>
chip_gen: v7x
topology: tpu7x:2x2x1
jax: 0.10.0
libtpu: 0.0.40
codegen_flags: <defaults>
</compile_context>

<pallas_src>
import jax
import jax.numpy as jnp
from jax.experimental import pallas as pl
from jax.experimental.pallas import tpu as pltpu


# ---------------- Layer 1 (fused): relu((A@X)@W1 + b1) @ W2 -------------------

def gcn_layer1_kernel(a_ref, x_ref, w1_ref, b1_ref, w2_ref, o_ref, acc_ref):
    k = pl.program_id(1)

    @pl.when(k == 0)
    def _():
        acc_ref[...] = jnp.zeros_like(acc_ref)

    # bf16 x bf16 -> f32 accumulate on the MXU (A row-tile @ X K-tile).
    acc_ref[...] += jnp.dot(
        a_ref[...], x_ref[...], preferred_element_type=jnp.float32
    )

    @pl.when(k == pl.num_programs(1) - 1)
    def _():
        ax = acc_ref[...].astype(jnp.bfloat16)
        z1 = jnp.dot(ax, w1_ref[...], preferred_element_type=jnp.float32) + b1_ref[...]
        h1 = jnp.maximum(z1, 0.0).astype(jnp.bfloat16)
        # TODO(synk): training-mode dropout (p=0.5) would need pltpu.prng_seed +
        # pltpu.stateful_bernoulli with 1/(1-p) rescale; eval-mode dropout == identity.
        hw2 = jnp.dot(h1, w2_ref[...], preferred_element_type=jnp.float32)
        o_ref[...] = hw2.astype(o_ref.dtype)


def gcn_layer1(a_bf, x_bf, w1_bf, b1_f32, w2_bf, *, tile):
    n = a_bf.shape[0]
    h = x_bf.shape[1]
    return pl.pallas_call(
        gcn_layer1_kernel,
        out_shape=jax.ShapeDtypeStruct((n, h), jnp.bfloat16),
        grid=(n // tile, n // tile),                          # (row tiles, K tiles)
        in_specs=[
            pl.BlockSpec((tile, tile), lambda i, k: (i, k)),  # A_hat tile
            pl.BlockSpec((tile, h), lambda i, k: (k, 0)),     # X K-tile
            pl.BlockSpec((h, h), lambda i, k: (0, 0)),        # W1 (resident)
            pl.BlockSpec((1, h), lambda i, k: (0, 0)),        # b1 (resident, f32)
            pl.BlockSpec((h, h), lambda i, k: (0, 0)),        # W2 (resident)
        ],
        out_specs=pl.BlockSpec((tile, h), lambda i, k: (i, 0)),
        scratch_shapes=[pltpu.VMEM((tile, h), jnp.float32)],
        compiler_params=pltpu.CompilerParams(
            dimension_semantics=("parallel", "arbitrary"),
            vmem_limit_bytes=32 * 1024 * 1024,
        ),
    )(a_bf, x_bf, w1_bf, b1_f32, w2_bf)


# ------------------------ Layer 2 (fused): A@HW2 + b2 -------------------------

def gcn_layer2_kernel(a_ref, y_ref, b2_ref, o_ref, acc_ref):
    k = pl.program_id(1)

    @pl.when(k == 0)
    def _():
        acc_ref[...] = jnp.zeros_like(acc_ref)

    acc_ref[...] += jnp.dot(
        a_ref[...], y_ref[...], preferred_element_type=jnp.float32
    )

    @pl.when(k == pl.num_programs(1) - 1)
    def _():
        o_ref[...] = (acc_ref[...] + b2_ref[...]).astype(o_ref.dtype)


def gcn_layer2(a_bf, y_bf, b2_f32, *, tile):
    n = a_bf.shape[0]
    h = y_bf.shape[1]
    return pl.pallas_call(
        gcn_layer2_kernel,
        out_shape=jax.ShapeDtypeStruct((n, h), jnp.float32),
        grid=(n // tile, n // tile),
        in_specs=[
            pl.BlockSpec((tile, tile), lambda i, k: (i, k)),  # A_hat tile
            pl.BlockSpec((tile, h), lambda i, k: (k, 0)),     # HW2 K-tile
            pl.BlockSpec((1, h), lambda i, k: (0, 0)),        # b2 (resident, f32)
        ],
        out_specs=pl.BlockSpec((tile, h), lambda i, k: (i, 0)),
        scratch_shapes=[pltpu.VMEM((tile, h), jnp.float32)],
        compiler_params=pltpu.CompilerParams(
            dimension_semantics=("parallel", "arbitrary"),
            vmem_limit_bytes=32 * 1024 * 1024,
        ),
    )(a_bf, y_bf, b2_f32)


# --------------------------------- forward -----------------------------------

def _pad2d(arr, rows, cols):
    return jnp.pad(arr, ((0, rows - arr.shape[0]), (0, cols - arr.shape[1])))


def gnn_forward(a_hat, x, w1, b1, w2, b2, *, tile=128):
    n, h = x.shape
    n_pad = pl.cdiv(n, tile) * tile
    h_pad = pl.cdiv(h, 128) * 128              # lane-dense feature dim

    a_p = _pad2d(a_hat, n_pad, n_pad).astype(jnp.bfloat16)
    x_p = _pad2d(x, n_pad, h_pad).astype(jnp.bfloat16)
    w1_p = _pad2d(w1, h_pad, h_pad).astype(jnp.bfloat16)
    w2_p = _pad2d(w2, h_pad, h_pad).astype(jnp.bfloat16)
    b1_p = _pad2d(b1, 1, h_pad)                # biases stay f32
    b2_p = _pad2d(b2, 1, h_pad)

    # Layer 1 + feature transform of layer 2, fused: relu((A@X)@W1 + b1) @ W2
    hw2 = gcn_layer1(a_p, x_p, w1_p, b1_p, w2_p, tile=tile)
    # Layer 2 propagation: A @ hw2 + b2
    out = gcn_layer2(a_p, hw2, b2_p, tile=tile)
    return out[:n, :h]


# ------------------------- GCN normalization (glue) ---------------------------

def build_normalized_adjacency(edge_index, edge_weight, num_nodes):
    """Dense D^{-1/2}(A+I)D^{-1/2}, matching torch_geometric gcn_norm defaults."""
    row = edge_index[0]          # source nodes
    col = edge_index[1]          # target nodes
    loop = jnp.arange(num_nodes, dtype=edge_index.dtype)
    row = jnp.concatenate([row, loop])
    col = jnp.concatenate([col, loop])
    w = jnp.concatenate([edge_weight,
                         jnp.ones((num_nodes,), dtype=edge_weight.dtype)])

    deg = jnp.zeros((num_nodes,), dtype=jnp.float32).at[col].add(w)
    deg_inv_sqrt = jnp.where(deg > 0.0, 1.0 / jnp.sqrt(deg), 0.0)
    norm = deg_inv_sqrt[row] * w * deg_inv_sqrt[col]

    # out[target] += norm * h[source]  =>  A_hat[target, source] = norm
    a_hat = jnp.zeros((num_nodes, num_nodes), dtype=jnp.float32).at[col, row].add(norm)
    return a_hat


# ----------------------------------- main -------------------------------------

if __name__ == "__main__":
    num_nodes = 256
    hidden_dim = 64
    num_edges = 1024

    key = jax.random.PRNGKey(0)
    k_x, k_src, k_dst, k_ew, k_w1, k_b1, k_w2, k_b2 = jax.random.split(key, 8)

    # Node features [N, hidden]
    x = jax.random.normal(k_x, (num_nodes, hidden_dim), dtype=jnp.float32)

    # Random graph: edge_index [2, E], edge_weight [E]
    src = jax.random.randint(k_src, (num_edges,), 0, num_nodes, dtype=jnp.int32)
    dst = jax.random.randint(k_dst, (num_edges,), 0, num_nodes, dtype=jnp.int32)
    edge_index = jnp.stack([src, dst], axis=0)
    edge_weight = jax.random.uniform(k_ew, (num_edges,), dtype=jnp.float32,
                                     minval=0.1, maxval=1.0)

    # GCNConv parameters (weights stored as [in, out] == torch Linear weight.T)
    scale = 1.0 / jnp.sqrt(hidden_dim)
    w1 = jax.random.uniform(k_w1, (hidden_dim, hidden_dim), jnp.float32, -scale, scale)
    b1 = jax.random.uniform(k_b1, (1, hidden_dim), jnp.float32, -scale, scale)
    w2 = jax.random.uniform(k_w2, (hidden_dim, hidden_dim), jnp.float32, -scale, scale)
    b2 = jax.random.uniform(k_b2, (1, hidden_dim), jnp.float32, -scale, scale)

    a_hat = build_normalized_adjacency(edge_index, edge_weight, num_nodes)

    out = gnn_forward(a_hat, x, w1, b1, w2, b2)
    jax.block_until_ready(out)

    # Full-f32 reference mirroring the PyTorch module (eval mode: dropout = id).
    h1_r = jnp.maximum(a_hat @ (x @ w1) + b1, 0.0)
    out_ref = a_hat @ (h1_r @ w2) + b2

    assert out.shape == (num_nodes, hidden_dim)
    assert jnp.allclose(out, out_ref, atol=5e-2, rtol=5e-2), "mismatch vs reference"

    print("KERNEL_OK")
</pallas_src>

<mosaic_0001>
module attributes {stable_mosaic.version = 11 : i64} {
  func.func @gcn_layer1_kernel(%arg0: i32, %arg1: i32, %arg2: memref<128x128xbf16, #tpu.memory_space<vmem>>, %arg3: memref<128x128xbf16, #tpu.memory_space<vmem>>, %arg4: memref<128x128xbf16, #tpu.memory_space<vmem>>, %arg5: memref<1x128xf32, #tpu.memory_space<vmem>>, %arg6: memref<128x128xbf16, #tpu.memory_space<vmem>>, %arg7: memref<128x128xbf16, #tpu.memory_space<vmem>>, %arg8: memref<128x128xf32, #tpu.memory_space<vmem>>) attributes {dimension_semantics = [#tpu.dimension_semantics<parallel>, #tpu.dimension_semantics<arbitrary>], iteration_bounds = array<i64: 2, 2>, scalar_prefetch = 0 : i64, scratch_operands = 1 : i64, tpu.core_type = #tpu.core_type<tc>, window_params = [{transform_indices = @transform_0, window_bounds = array<i64: 128, 128>}, {transform_indices = @transform_1, window_bounds = array<i64: 128, 128>}, {pipeline_mode = #tpu.pipeline_mode<synchronous>, transform_indices = @transform_2, window_bounds = array<i64: 128, 128>}, {pipeline_mode = #tpu.pipeline_mode<synchronous>, transform_indices = @transform_3, window_bounds = array<i64: 1, 128>}, {pipeline_mode = #tpu.pipeline_mode<synchronous>, transform_indices = @transform_4, window_bounds = array<i64: 128, 128>}, {transform_indices = @transform_5, window_bounds = array<i64: 128, 128>}]} {
    %c0_i32 = arith.constant 0 : i32
    %0 = arith.cmpi eq, %arg1, %c0_i32 : i32
    %1 = arith.extui %0 : i1 to i32
    %c0_i32_0 = arith.constant 0 : i32
    %2 = arith.cmpi ne, %1, %c0_i32_0 : i32
    scf.if %2 {
      %cst_9 = arith.constant 0.000000e+00 : f32
      %12 = vector.broadcast %cst_9 : f32 to vector<128x128xf32>
      %c0_10 = arith.constant 0 : index
      %c0_11 = arith.constant 0 : index
      %13 = vector.load %arg8[%c0_10, %c0_11] : memref<128x128xf32, #tpu.memory_space<vmem>>, vector<128x128xf32>
      tpu.vector_store %arg8[%c0_10, %c0_11], %12 {strides = array<i32>} : memref<128x128xf32, #tpu.memory_space<vmem>>, vector<128x128xf32>,
    } else {
    }
    %c0 = arith.constant 0 : index
    %c0_1 = arith.constant 0 : index
    %3 = vector.load %arg8[%c0, %c0_1] : memref<128x128xf32, #tpu.memory_space<vmem>>, vector<128x128xf32>
    %c0_2 = arith.constant 0 : index
    %c0_3 = arith.constant 0 : index
    %4 = vector.load %arg2[%c0_2, %c0_3] : memref<128x128xbf16, #tpu.memory_space<vmem>>, vector<128x128xbf16>
    %c0_4 = arith.constant 0 : index
    %c0_5 = arith.constant 0 : index
    %5 = vector.load %arg3[%c0_4, %c0_5] : memref<128x128xbf16, #tpu.memory_space<vmem>>, vector<128x128xbf16>
    %cst = arith.constant dense<0.000000e+00> : vector<128x128xf32>
    %6 = tpu.matmul %4, %5, %cst {dimension_numbers = #tpu.dot_dimension_numbers<[1], [0], [0], [1], [0, 0, 1, 1], [], []>} : vector<128x128xbf16>, vector<128x128xbf16>, vector<128x128xf32> -> vector<128x128xf32>
    %7 = arith.addf %3, %6 : vector<128x128xf32>
    %c0_6 = arith.constant 0 : index
    %c0_7 = arith.constant 0 : index
    %8 = vector.load %arg8[%c0_6, %c0_7] : memref<128x128xf32, #tpu.memory_space<vmem>>, vector<128x128xf32>
    tpu.vector_store %arg8[%c0_6, %c0_7], %7 {strides = array<i32>} : memref<128x128xf32, #tpu.memory_space<vmem>>, vector<128x128xf32>,
    %c1_i32 = arith.constant 1 : i32
    %9 = arith.cmpi eq, %arg1, %c1_i32 : i32
    %10 = arith.extui %9 : i1 to i32
    %c0_i32_8 = arith.constant 0 : i32
    %11 = arith.cmpi ne, %10, %c0_i32_8 : i32
    scf.if %11 {
      %c0_9 = arith.constant 0 : index
      %c0_10 = arith.constant 0 : index
      %12 = vector.load %arg8[%c0_9, %c0_10] : memref<128x128xf32, #tpu.memory_space<vmem>>, vector<128x128xf32>
      %13 = arith.truncf %12 : vector<128x128xf32> to vector<128x128xbf16>
      %c0_11 = arith.constant 0 : index
      %c0_12 = arith.constant 0 : index
      %14 = vector.load %arg4[%c0_11, %c0_12] : memref<128x128xbf16, #tpu.memory_space<vmem>>, vector<128x128xbf16>
      %cst_13 = arith.constant dense<0.000000e+00> : vector<128x128xf32>
      %15 = tpu.matmul %13, %14, %cst_13 {dimension_numbers = #tpu.dot_dimension_numbers<[1], [0], [0], [1], [0, 0, 1, 1], [], []>} : vector<128x128xbf16>, vector<128x128xbf16>, vector<128x128xf32> -> vector<128x128xf32>
      %c0_14 = arith.constant 0 : index
      %c0_15 = arith.constant 0 : index
      %16 = vector.load %arg5[%c0_14, %c0_15] : memref<1x128xf32, #tpu.memory_space<vmem>>, vector<1x128xf32>
      %17 = vector.broadcast %16 : vector<1x128xf32> to vector<128x128xf32>
      %18 = arith.addf %15, %17 : vector<128x128xf32>
      %cst_16 = arith.constant 0.000000e+00 : f32
      %19 = vector.broadcast %cst_16 : f32 to vector<128x128xf32>
      %20 = arith.maximumf %18, %19 : vector<128x128xf32>
      %21 = arith.truncf %20 : vector<128x128xf32> to vector<128x128xbf16>
      %c0_17 = arith.constant 0 : index
      %c0_18 = arith.constant 0 : index
      %22 = vector.load %arg6[%c0_17, %c0_18] : memref<128x128xbf16, #tpu.memory_space<vmem>>, vector<128x128xbf16>
      %cst_19 = arith.constant dense<0.000000e+00> : vector<128x128xf32>
      %23 = tpu.matmul %21, %22, %cst_19 {dimension_numbers = #tpu.dot_dimension_numbers<[1], [0], [0], [1], [0, 0, 1, 1], [], []>} : vector<128x128xbf16>, vector<128x128xbf16>, vector<128x128xf32> -> vector<128x128xf32>
      %24 = arith.truncf %23 : vector<128x128xf32> to vector<128x128xbf16>
      %c0_20 = arith.constant 0 : index
      %c0_21 = arith.constant 0 : index
      %25 = vector.load %arg7[%c0_20, %c0_21] : memref<128x128xbf16, #tpu.memory_space<vmem>>, vector<128x128xbf16>
      tpu.vector_store %arg7[%c0_20, %c0_21], %24 {strides = array<i32>} : memref<128x128xbf16, #tpu.memory_space<vmem>>, vector<128x128xbf16>,
    } else {
    }
    return
  }
  func.func @transform_0(%arg0: i32, %arg1: i32) -> (i32, i32) {
    %c0_i32 = arith.constant 0 : i32
    return %arg0, %arg1 : i32, i32
  }
  func.func @transform_1(%arg0: i32, %arg1: i32) -> (i32, i32) {
    %c0_i32 = arith.constant 0 : i32
    %c0_i32_0 = arith.constant 0 : i32
    return %arg1, %c0_i32 : i32, i32
  }
  func.func @transform_2(%arg0: i32, %arg1: i32) -> (i32, i32) {
    %c0_i32 = arith.constant 0 : i32
    %c0_i32_0 = arith.constant 0 : i32
    %c0_i32_1 = arith.constant 0 : i32
    return %c0_i32, %c0_i32_0 : i32, i32
  }
  func.func @transform_3(%arg0: i32, %arg1: i32) -> (i32, i32) {
    %c0_i32 = arith.constant 0 : i32
    %c0_i32_0 = arith.constant 0 : i32
    %c0_i32_1 = arith.constant 0 : i32
    return %c0_i32, %c0_i32_0 : i32, i32
  }
  func.func @transform_4(%arg0: i32, %arg1: i32) -> (i32, i32) {
    %c0_i32 = arith.constant 0 : i32
    %c0_i32_0 = arith.constant 0 : i32
    %c0_i32_1 = arith.constant 0 : i32
    return %c0_i32, %c0_i32_0 : i32, i32
  }
  func.func @transform_5(%arg0: i32, %arg1: i32) -> (i32, i32) {
    %c0_i32 = arith.constant 0 : i32
    %c0_i32_0 = arith.constant 0 : i32
    return %arg0, %c0_i32 : i32, i32
  }
}

</mosaic_0001>

<llo_original>
// kernel: tpu_custom_call.1
$region0: #{tpu_custom_call.1}
  #allocation0 [shape = 'u32[]', space=smem, size = 0x4, offset = 0x4, fixed_abs, tag = 'smem constant byte address 0x4 - core index']
  #allocation1 [shape = 'u32[144,128]{1,0:T(1,128)}', space=vmem, size = 0x12000, scoped, tag = 'internal scratch']
  #allocation2 [shape = 'f32[128,128]{1,0:T(8,128)}', space=vmem, size = 0x10000, scoped, tag = 'scratch operand']
  %s0 = inlined_call_operand.hbm [shape: bf16[256,256], index: 0, kind: input, shape index: {}]
  %s1 = inlined_call_operand.hbm [shape: bf16[256,128], index: 1, kind: input, shape index: {}]
  %s2 = inlined_call_operand.hbm [shape: bf16[128,128], index: 2, kind: input, shape index: {}]
  %s3 = inlined_call_operand.vmem [shape: f32[1,128], index: 3, kind: input, shape index: {}]
  %s4 = inlined_call_operand.hbm [shape: bf16[128,128], index: 4, kind: input, shape index: {}]
  %s5 = inlined_call_operand.hbm [shape: bf16[256,128], index: 5, kind: output, shape index: {}]
  %s6 = sld [smem:[#allocation0]]
  $region77: #{tpu_custom_call.1} parent=0
    _
  %s8 = ssub.s32 1, %s6
  %s9 = scalar_select 0, %s8, %s6
  $region1: #{tpu_custom_call.1} parent=0
    #allocation3 [shape = 'u8[65536]{0}', space=vmem, size = 0x10000, scoped, tag = 'input window, operand 0']
    #allocation4 [shape = 's32[2]{0}', space=sflag, size = 0x8, scoped, tag = 'scoped memory for tpu_custom_call.1']
    #allocation5 [shape = 's32[2]{0}', space=sflag, size = 0x8, scoped, tag = 'scoped memory for tpu_custom_call.1']
    #allocation6 [shape = 'u8[65536]{0}', space=vmem, size = 0x10000, scoped, tag = 'input window, operand 1']
    #allocation7 [shape = 's32[2]{0}', space=sflag, size = 0x8, scoped, tag = 'scoped memory for tpu_custom_call.1']
    #allocation8 [shape = 'u8[32768]{0}', space=vmem, size = 0x8000, scoped, tag = 'input window, operand 2, single buffered']
    #allocation9 [shape = 'u8[32768]{0}', space=vmem, size = 0x8000, scoped, tag = 'input window, operand 4, single buffered']
    #allocation10 [shape = 's32[1]{0}', space=sflag, size = 0x4, scoped, tag = 'scoped memory for tpu_custom_call.1']
    #allocation11 [shape = 'u8[65536]{0}', space=vmem, size = 0x10000, scoped, tag = 'output window, operand 0']
    %10 = vsyncpa [#allocation4], 0
    %s11 = scalar_lea.sflag [#allocation4], 1
    %12 = vsyncpa %s11, 0
    %13 = vsyncpa [#allocation7], 0
    %s14 = scalar_lea.sflag [#allocation7], 1
    %15 = vsyncpa %s14, 0
    %16 = vsyncpa [#allocation10], 0
    %17 = vsyncpa [#allocation5], 0
    %s18 = scalar_lea.sflag [#allocation5], 1
    %19 = vsyncpa %s18, 0
    loop: start=0, step=1, limit=6
    $region2: #{tpu_custom_call.1} parent=1 // loop_pre_header
      _
    $region3: #{tpu_custom_call.1} parent=1 // loop_header
      %s21 = sphi 0, %s25
      %p22 = scmp.ge.s32.totalorder %s21, 6
      %s28 = sphi 0, %s40
      %s29 = sphi 0, %s36
      %s30 = sphi 0, %s28
      %s31 = sphi 0, %s29
      %s32 = sphi 0, %s30
      %s33 = sphi 0, %s31
      %s45 = sphi 0, %s47
      %s48 = sphi 0, %s45
      %s49 = sphi 0, %s48
      %s65 = sphi 0, %s49
      %s71 = sphi 0, %s73
      %s74 = sphi 0, %s71
      %s75 = sphi 0, %s74
      %s91 = sphi 0, %s75
      %s95 = sphi 0, %s95
      %s97 = sphi 0, %s95
      %s98 = sphi 0, %s97
      %s112 = sphi 0, %s98
      %s116 = sphi 0, %s116
      %s118 = sphi 0, %s116
      %s119 = sphi 0, %s118
      %s133 = sphi 0, %s119
      %s137 = sphi 0, %s137
      %s139 = sphi 0, %s137
      %s140 = sphi 0, %s139
      %s154 = sphi 0, %s140
      %s160 = sphi 0, %s162
      %s163 = sphi 0, %s160
      %s164 = sphi 0, %s163
      %s180 = sphi 0, %s164
    $region4: #{tpu_custom_call.1} parent=1 // loop_header_branch
      %24 = sbr.rel (%p22) target = $region8
    $region5: #{tpu_custom_call.1} parent=1 // loop_body
      %s26 = ssub.s32 %s21, 1
      %s27 = ssub.s32 %s21, 2
      %s34 = sadd.s32 1, %s29
      %p35 = scmp.ge.s32.totalorder %s34, 2
      %s36 = scalar_select %p35, 0, %s34
      %s37 = sadd.s32 1, %s28
      %s38 = scalar_select %p35, %s37, %s28
      %p39 = scmp.ge.s32.totalorder %s38, 2
      %s40 = scalar_select %p39, 0, %s38
      %s41 = ssub.s32 %s28, %s40
      %s42 = ssub.s32 %s29, %s36
      %s43 = sor.u32 %s41, %s42
      %p44 = scmp.eq.s32.totalorder %s43, 0
      %s46 = sadd.s32 %s45, 1
      %s47 = scalar_select %p44, %s45, %s46
      %p50 = pneg %p44
      %p51 = scmp.eq.s32.totalorder %s21, 3
      %p52 = por %p50, %p51
      %p53 = scmp.ne.s32.totalorder %s45, %s48
      %p54 = scmp.eq.s32.totalorder %s21, 0
      %p55 = por %p53, %p54
      %p56 = scmp.ne.s32.totalorder %s45, %s48
      %p57 = scmp.eq.s32.totalorder %s26, 3
      %p58 = por %p56, %p57
      %p59 = scmp.ne.s32.totalorder %s48, %s49
      %p60 = scmp.eq.s32.totalorder %s26, 0
      %p61 = por %p59, %p60
      %p62 = scmp.ne.s32.totalorder %s48, %s49
      %p63 = scmp.eq.s32.totalorder %s27, 3
      %p64 = por %p62, %p63
      %p66 = scmp.ne.s32.totalorder %s49, %s65
      %p67 = scmp.eq.s32.totalorder %s27, 0
      %p68 = por %p66, %p67
      %s69 = ssub.s32 %s29, %s36
      %p70 = scmp.eq.s32.totalorder %s69, 0
      %s72 = sadd.s32 %s71, 1
      %s73 = scalar_select %p70, %s71, %s72
      %p76 = pneg %p70
      %p77 = scmp.eq.s32.totalorder %s21, 3
      %p78 = por %p76, %p77
      %p79 = scmp.ne.s32.totalorder %s71, %s74
      %p80 = scmp.eq.s32.totalorder %s21, 0
      %p81 = por %p79, %p80
      %p82 = scmp.ne.s32.totalorder %s71, %s74
      %p83 = scmp.eq.s32.totalorder %s26, 3
      %p84 = por %p82, %p83
      %p85 = scmp.ne.s32.totalorder %s74, %s75
      %p86 = scmp.eq.s32.totalorder %s26, 0
      %p87 = por %p85, %p86
      %p88 = scmp.ne.s32.totalorder %s74, %s75
      %p89 = scmp.eq.s32.totalorder %s27, 3
      %p90 = por %p88, %p89
      %p92 = scmp.ne.s32.totalorder %s75, %s91
      %p93 = scmp.eq.s32.totalorder %s27, 0
      %p94 = por %p92, %p93
      %s96 = sadd.s32 %s95, 1
      %p99 = scmp.eq.s32.totalorder %s21, 3
      %p100 = scmp.ne.s32.totalorder %s95, %s97
      %p101 = scmp.eq.s32.totalorder %s21, 0
      %p102 = por %p100, %p101
      %p103 = scmp.ne.s32.totalorder %s95, %s97
      %p104 = scmp.eq.s32.totalorder %s26, 3
      %p105 = por %p103, %p104
      %p106 = scmp.ne.s32.totalorder %s97, %s98
      %p107 = scmp.eq.s32.totalorder %s26, 0
      %p108 = por %p106, %p107
      %p109 = scmp.ne.s32.totalorder %s97, %s98
      %p110 = scmp.eq.s32.totalorder %s27, 3
      %p111 = por %p109, %p110
      %p113 = scmp.ne.s32.totalorder %s98, %s112
      %p114 = scmp.eq.s32.totalorder %s27, 0
      %p115 = por %p113, %p114
      %s117 = sadd.s32 %s116, 1
      %p120 = scmp.eq.s32.totalorder %s21, 3
      %p121 = scmp.ne.s32.totalorder %s116, %s118
      %p122 = scmp.eq.s32.totalorder %s21, 0
      %p123 = por %p121, %p122
      %p124 = scmp.ne.s32.totalorder %s116, %s118
      %p125 = scmp.eq.s32.totalorder %s26, 3
      %p126 = por %p124, %p125
      %p127 = scmp.ne.s32.totalorder %s118, %s119
      %p128 = scmp.eq.s32.totalorder %s26, 0
      %p129 = por %p127, %p128
      %p130 = scmp.ne.s32.totalorder %s118, %s119
      %p131 = scmp.eq.s32.totalorder %s27, 3
      %p132 = por %p130, %p131
      %p134 = scmp.ne.s32.totalorder %s119, %s133
      %p135 = scmp.eq.s32.totalorder %s27, 0
      %p136 = por %p134, %p135
      %s138 = sadd.s32 %s137, 1
      %p141 = scmp.eq.s32.totalorder %s21, 3
      %p142 = scmp.ne.s32.totalorder %s137, %s139
      %p143 = scmp.eq.s32.totalorder %s21, 0
      %p144 = por %p142, %p143
      %p145 = scmp.ne.s32.totalorder %s137, %s139
      %p146 = scmp.eq.s32.totalorder %s26, 3
      %p147 = por %p145, %p146
      %p148 = scmp.ne.s32.totalorder %s139, %s140
      %p149 = scmp.eq.s32.totalorder %s26, 0
      %p150 = por %p148, %p149
      %p151 = scmp.ne.s32.totalorder %s139, %s140
      %p152 = scmp.eq.s32.totalorder %s27, 3
      %p153 = por %p151, %p152
      %p155 = scmp.ne.s32.totalorder %s140, %s154
      %p156 = scmp.eq.s32.totalorder %s27, 0
      %p157 = por %p155, %p156
      %s158 = ssub.s32 %s28, %s40
      %p159 = scmp.eq.s32.totalorder %s158, 0
      %s161 = sadd.s32 %s160, 1
      %s162 = scalar_select %p159, %s160, %s161
      %p165 = pneg %p159
      %p166 = scmp.eq.s32.totalorder %s21, 3
      %p167 = por %p165, %p166
      %p168 = scmp.ne.s32.totalorder %s160, %s163
      %p169 = scmp.eq.s32.totalorder %s21, 0
      %p170 = por %p168, %p169
      %p171 = scmp.ne.s32.totalorder %s160, %s163
      %p172 = scmp.eq.s32.totalorder %s26, 3
      %p173 = por %p171, %p172
      %p174 = scmp.ne.s32.totalorder %s163, %s164
      %p175 = scmp.eq.s32.totalorder %s26, 0
      %p176 = por %p174, %p175
      %p177 = scmp.ne.s32.totalorder %s163, %s164
      %p178 = scmp.eq.s32.totalorder %s27, 3
      %p179 = por %p177, %p178
      %p181 = scmp.ne.s32.totalorder %s164, %s180
      %p182 = scmp.eq.s32.totalorder %s27, 0
      %p183 = por %p181, %p182
      %p184 = scmp.le.s32.totalorder 1, %s21
      %p185 = scmp.lt.s32.totalorder %s21, 5
      %p186 = pnand %p184, %p185
      %p187 = pneg %p186
      // Predicated region
      $region9: #{tpu_custom_call.1} parent=5 // pred_check
        _
      $region10: #{tpu_custom_call.1} parent=5 // pred_check_branch
        %189 = sbr.rel (%p186) target = $region12
      $region11: #{tpu_custom_call.1} parent=5 // pred_region
        %s190 = ssub.s32 %s21, 1
        // Predicated region
        $region13: #{tpu_custom_call.1} parent=11 // pred_check
          %p191 = pneg %p108
        $region14: #{tpu_custom_call.1} parent=11 // pred_check_branch
          %193 = sbr.rel (%p191) target = $region16
        $region15: #{tpu_custom_call.1} parent=11 // pred_region
          %s195 = ssub.s32 1024, 1024
          %196 = vsyncadd [#allocation7], %s195
          %s197 = sshll.u32 [#allocation8], 4
          %s198 = int_to_ptr.vmem [resolvable:$true] %s197
          %203 = dma.hbm_to_vmem [thread:$0]  %s2, 1024, %s198, [#allocation7], 64, 64, 4
        $region16: #{tpu_custom_call.1} parent=11 // pred_fallthru
          _
        // Predicated region
        $region17: #{tpu_custom_call.1} parent=11 // pred_check
          %p204 = pneg %p129
        $region18: #{tpu_custom_call.1} parent=11 // pred_check_branch
          %206 = sbr.rel (%p204) target = $region20
        $region19: #{tpu_custom_call.1} parent=11 // pred_region
          _
        $region20: #{tpu_custom_call.1} parent=11 // pred_fallthru
          _
        // Predicated region
        $region21: #{tpu_custom_call.1} parent=11 // pred_check
          %p207 = pneg %p150
        $region22: #{tpu_custom_call.1} parent=11 // pred_check_branch
          %209 = sbr.rel (%p207) target = $region24
        $region23: #{tpu_custom_call.1} parent=11 // pred_region
          %s211 = ssub.s32 1024, 1024
          %212 = vsyncadd [#allocation10], %s211
          %s213 = sshll.u32 [#allocation9], 4
          %s214 = int_to_ptr.vmem [resolvable:$true] %s213
          %219 = dma.hbm_to_vmem [thread:$0]  %s4, 1024, %s214, [#allocation10], 64, 64, 4
        $region24: #{tpu_custom_call.1} parent=11 // pred_fallthru
          _
      $region12: #{tpu_custom_call.1} parent=5 // pred_fallthru
        _
      %p220 = scmp.lt.s32.totalorder %s21, 4
      // Predicated region
      $region25: #{tpu_custom_call.1} parent=5 // pred_check
        %p221 = pneg %p220
      $region26: #{tpu_custom_call.1} parent=5 // pred_check_branch
        %223 = sbr.rel (%p221) target = $region28
      $region27: #{tpu_custom_call.1} parent=5 // pred_region
        // Predicated region
        $region29: #{tpu_custom_call.1} parent=27 // pred_check
          %p224 = pneg %p55
        $region30: #{tpu_custom_call.1} parent=27 // pred_check_branch
          %226 = sbr.rel (%p224) target = $region32
        $region31: #{tpu_custom_call.1} parent=27 // pred_region
          %s227 = sand.u32 %s45, 1
          %s228 = scalar_lea.sflag [#allocation4], %s227
          %s229 = sand.u32 %s45, 1
          %s230 = smul.addr %s229, 64
          %s231 = scalar_lea.vmem [#allocation3], %s230
          %s232 = smul.u32 16, %s28
          %s234 = ssub.s32 1024, 1024
          %235 = vsyncadd %s228, %s234
          %s236 = smul.addr %s232, 2
          %s237 = sadd.s32 %s29, %s236
          %s238 = smul.addr %s237, 64
          %s239 = scalar_lea.hbm %s0, %s238
          %s240 = sshll.u32 %s231, 4
          %s241 = int_to_ptr.vmem [resolvable:$true] %s240
          %246 = dma.hbm_to_vmem [thread:$0]  %s239, 1024, %s241, %s228, 128, 64, 4
        $region32: #{tpu_custom_call.1} parent=27 // pred_fallthru
          _
        // Predicated region
        $region33: #{tpu_custom_call.1} parent=27 // pred_check
          %p247 = pneg %p81
        $region34: #{tpu_custom_call.1} parent=27 // pred_check_branch
          %249 = sbr.rel (%p247) target = $region36
        $region35: #{tpu_custom_call.1} parent=27 // pred_region
          %s250 = sand.u32 %s21, 1
          %s251 = scalar_lea.sflag [#allocation7], %s250
          %s252 = sand.u32 %s71, 1
          %s253 = smul.addr %s252, 64
          %s254 = scalar_lea.vmem [#allocation6], %s253
          %s255 = smul.u32 16, %s29
          %s257 = ssub.s32 1024, 1024
          %258 = vsyncadd %s251, %s257
          %s259 = smul.addr %s255, 64
          %s260 = scalar_lea.hbm %s1, %s259
          %s261 = sshll.u32 %s254, 4
          %s262 = int_to_ptr.vmem [resolvable:$true] %s261
          %267 = dma.hbm_to_vmem [thread:$0]  %s260, 1024, %s262, %s251, 64, 64, 4
        $region36: #{tpu_custom_call.1} parent=27 // pred_fallthru
          _
      $region28: #{tpu_custom_call.1} parent=5 // pred_fallthru
        _
      %p268 = scmp.le.s32.totalorder 1, %s21
      %p269 = scmp.lt.s32.totalorder %s21, 5
      %p270 = pnand %p268, %p269
      %p271 = pneg %p270
      // Predicated region
      $region37: #{tpu_custom_call.1} parent=5 // pred_check
        _
      $region38: #{tpu_custom_call.1} parent=5 // pred_check_branch
        %273 = sbr.rel (%p270) target = $region40
      $region39: #{tpu_custom_call.1} parent=5 // pred_region
        %s274 = ssub.s32 %s21, 1
        %s275 = sand.u32 %s48, 1
        %s276 = scalar_lea.sflag [#allocation4], %s275
        %s277 = sand.u32 %s48, 1
        %s278 = smul.addr %s277, 64
        %s279 = scalar_lea.vmem [#allocation3], %s278
        // Predicated region
        $region41: #{tpu_custom_call.1} parent=39 // pred_check
          %p280 = pneg %p61
        $region42: #{tpu_custom_call.1} parent=39 // pred_check_branch
          %282 = sbr.rel (%p280) target = $region44
        $region43: #{tpu_custom_call.1} parent=39 // pred_region
          %283 = dma.done %s276, 1024
        $region44: #{tpu_custom_call.1} parent=39 // pred_fallthru
          _
        %s284 = sand.u32 %s26, 1
        %s285 = scalar_lea.sflag [#allocation7], %s284
        %s286 = sand.u32 %s74, 1
        %s287 = smul.addr %s286, 64
        %s288 = scalar_lea.vmem [#allocation6], %s287
        // Predicated region
        $region45: #{tpu_custom_call.1} parent=39 // pred_check
          %p289 = pneg %p87
        $region46: #{tpu_custom_call.1} parent=39 // pred_check_branch
          %291 = sbr.rel (%p289) target = $region48
        $region47: #{tpu_custom_call.1} parent=39 // pred_region
          %292 = dma.done %s285, 1024
        $region48: #{tpu_custom_call.1} parent=39 // pred_fallthru
          _
        // Predicated region
        $region49: #{tpu_custom_call.1} parent=39 // pred_check
          %p293 = pneg %p108
        $region50: #{tpu_custom_call.1} parent=39 // pred_check_branch
          %295 = sbr.rel (%p293) target = $region52
        $region51: #{tpu_custom_call.1} parent=39 // pred_region
          %296 = dma.done [#allocation7], 1024
        $region52: #{tpu_custom_call.1} parent=39 // pred_fallthru
          _
        // Predicated region
        $region53: #{tpu_custom_call.1} parent=39 // pred_check
          %p297 = pneg %p150
        $region54: #{tpu_custom_call.1} parent=39 // pred_check_branch
          %299 = sbr.rel (%p297) target = $region56
        $region55: #{tpu_custom_call.1} parent=39 // pred_region
          %300 = dma.done [#allocation10], 1024
        $region56: #{tpu_custom_call.1} parent=39 // pred_fallthru
          _
        %s301 = sand.u32 %s48, 1
        %s302 = scalar_lea.sflag [#allocation4], %s301
        %s303 = sand.u32 %s48, 1
        %s304 = smul.addr %s303, 64
        %s305 = scalar_lea.vmem [#allocation3], %s304
        %p306 = pneg %p61
        %p307 = pneg %p58
        %s308 = sand.u32 %s26, 1
        %s309 = scalar_lea.sflag [#allocation7], %s308
        %s310 = sand.u32 %s74, 1
        %s311 = smul.addr %s310, 64
        %s312 = scalar_lea.vmem [#allocation6], %s311
        %p313 = pneg %p87
        %p314 = pneg %p84
        %p315 = pneg %p108
        %p316 = pneg %p105
        %p317 = pneg %p129
        %p318 = pneg %p126
        %p319 = pneg %p150
        %p320 = pneg %p147
        %p321 = pneg %p176
        %p322 = pneg %p173
        %s323 = sand.u32 %s163, 1
        %s324 = scalar_lea.sflag [#allocation5], %s323
        %s325 = sand.u32 %s163, 1
        %s326 = smul.addr %s325, 64
        %s327 = scalar_lea.vmem [#allocation11], %s326
        %s328 = smul.u32 16, %s30
        %s329 = smul.u32 16, %s31
        %s330 = smul.u32 16, %s30
        %p332 = scmp.eq.s32.totalorder %s31, 0
        // Predicated region
        $region57: #{tpu_custom_call.1} parent=39 // pred_check
          %p333 = pneg %p332
        $region58: #{tpu_custom_call.1} parent=39 // pred_check_branch
          %335 = sbr.rel (%p333) target = $region60
        $region59: #{tpu_custom_call.1} parent=39 // pred_region
          %336 = vst [vmem:[#allocation2] sm:$0xff] 0.0
          %337 = vst [vmem:[#allocation2 + $0x8] sm:$0xff] 0.0
          %338 = vst [vmem:[#allocation2 + $0x10] sm:$0xff] 0.0
          %339 = vst [vmem:[#allocation2 + $0x18] sm:$0xff] 0.0
          %340 = vst [vmem:[#allocation2 + $0x20] sm:$0xff] 0.0
          %341 = vst [vmem:[#allocation2 + $0x28] sm:$0xff] 0.0
          %342 = vst [vmem:[#allocation2 + $0x30] sm:$0xff] 0.0
          %343 = vst [vmem:[#allocation2 + $0x38] sm:$0xff] 0.0
          %344 = vst [vmem:[#allocation2 + $0x40] sm:$0xff] 0.0
          %345 = vst [vmem:[#allocation2 + $0x48] sm:$0xff] 0.0
          %346 = vst [vmem:[#allocation2 + $0x50] sm:$0xff] 0.0
          %347 = vst [vmem:[#allocation2 + $0x58] sm:$0xff] 0.0
          %348 = vst [vmem:[#allocation2 + $0x60] sm:$0xff] 0.0
          %349 = vst [vmem:[#allocation2 + $0x68] sm:$0xff] 0.0
          %350 = vst [vmem:[#allocation2 + $0x70] sm:$0xff] 0.0
          %351 = vst [vmem:[#allocation2 + $0x78] sm:$0xff] 0.0
        $region60: #{tpu_custom_call.1} parent=39 // pred_fallthru
          _
        %v352 = vld [vmem:[#allocation2] sm:$0xff]
        %v353 = vld [vmem:[#allocation2 + $0x8] sm:$0xff]
        %v354 = vld [vmem:[#allocation2 + $0x10] sm:$0xff]
        %v355 = vld [vmem:[#allocation2 + $0x18] sm:$0xff]
        %v356 = vld [vmem:[#allocation2 + $0x20] sm:$0xff]
        %v357 = vld [vmem:[#allocation2 + $0x28] sm:$0xff]
        %v358 = vld [vmem:[#allocation2 + $0x30] sm:$0xff]
        %v359 = vld [vmem:[#allocation2 + $0x38] sm:$0xff]
        %v360 = vld [vmem:[#allocation2 + $0x40] sm:$0xff]
        %v361 = vld [vmem:[#allocation2 + $0x48] sm:$0xff]
        %v362 = vld [vmem:[#allocation2 + $0x50] sm:$0xff]
        %v363 = vld [vmem:[#allocation2 + $0x58] sm:$0xff]
        %v364 = vld [vmem:[#allocation2 + $0x60] sm:$0xff]
        %v365 = vld [vmem:[#allocation2 + $0x68] sm:$0xff]
        %v366 = vld [vmem:[#allocation2 + $0x70] sm:$0xff]
        %v367 = vld [vmem:[#allocation2 + $0x78] sm:$0xff]
        %v368 = vld [vmem:[%s279] sm:$0xf]
        %v369 = vld [vmem:[%s279 + $0x4] sm:$0xf]
        %v370 = vld [vmem:[%s279 + $0x8] sm:$0xf]
        %v371 = vld [vmem:[%s279 + $0xc] sm:$0xf]
        %v372 = vld [vmem:[%s279 + $0x10] sm:$0xf]
        %v373 = vld [vmem:[%s279 + $0x14] sm:$0xf]
        %v374 = vld [vmem:[%s279 + $0x18] sm:$0xf]
        %v375 = vld [vmem:[%s279 + $0x1c] sm:$0xf]
        %v376 = vld [vmem:[%s279 + $0x20] sm:$0xf]
        %v377 = vld [vmem:[%s279 + $0x24] sm:$0xf]
        %v378 = vld [vmem:[%s279 + $0x28] sm:$0xf]
        %v379 = vld [vmem:[%s279 + $0x2c] sm:$0xf]
        %v380 = vld [vmem:[%s279 + $0x30] sm:$0xf]
        %v381 = vld [vmem:[%s279 + $0x34] sm:$0xf]
        %v382 = vld [vmem:[%s279 + $0x38] sm:$0xf]
        %v383 = vld [vmem:[%s279 + $0x3c] sm:$0xf]
        %v384 = vld [vmem:[%s288] sm:$0xf]
        %v385 = vld [vmem:[%s288 + $0x4] sm:$0xf]
        %v386 = vld [vmem:[%s288 + $0x8] sm:$0xf]
        %v387 = vld [vmem:[%s288 + $0xc] sm:$0xf]
        %v388 = vld [vmem:[%s288 + $0x10] sm:$0xf]
        %v389 = vld [vmem:[%s288 + $0x14] sm:$0xf]
        %v390 = vld [vmem:[%s288 + $0x18] sm:$0xf]
        %v391 = vld [vmem:[%s288 + $0x1c] sm:$0xf]
        %v392 = vld [vmem:[%s288 + $0x20] sm:$0xf]
        %v393 = vld [vmem:[%s288 + $0x24] sm:$0xf]
        %v394 = vld [vmem:[%s288 + $0x28] sm:$0xf]
        %v395 = vld [vmem:[%s288 + $0x2c] sm:$0xf]
        %v396 = vld [vmem:[%s288 + $0x30] sm:$0xf]
        %v397 = vld [vmem:[%s288 + $0x34] sm:$0xf]
        %v398 = vld [vmem:[%s288 + $0x38] sm:$0xf]
        %v399 = vld [vmem:[%s288 + $0x3c] sm:$0xf]
        %v416 = vunpack.c.l.b16 %v368
        %v417 = vunpack.c.l.b16 %v369
        %v418 = vunpack.c.l.b16 %v370
        %v419 = vunpack.c.l.b16 %v371
        %v420 = vunpack.c.l.b16 %v372
        %v421 = vunpack.c.l.b16 %v373
        %v422 = vunpack.c.l.b16 %v374
        %v423 = vunpack.c.l.b16 %v375
        %v424 = vunpack.c.l.b16 %v376
        %v425 = vunpack.c.l.b16 %v377
        %v426 = vunpack.c.l.b16 %v378
        %v427 = vunpack.c.l.b16 %v379
        %v428 = vunpack.c.l.b16 %v380
        %v429 = vunpack.c.l.b16 %v381
        %v430 = vunpack.c.l.b16 %v382
        %v431 = vunpack.c.l.b16 %v383
        %v432 = vpack.c.b16 %v417, %v416
        %v433 = vpack.c.b16 %v419, %v418
        %v434 = vpack.c.b16 %v421, %v420
        %v435 = vpack.c.b16 %v423, %v422
        %v436 = vpack.c.b16 %v425, %v424
        %v437 = vpack.c.b16 %v427, %v426
        %v438 = vpack.c.b16 %v429, %v428
        %v439 = vpack.c.b16 %v431, %v430
        %v464 = vunpack.c.l.b16 %v384
        %v465 = vunpack.c.l.b16 %v385
        %v466 = vunpack.c.l.b16 %v386
        %v467 = vunpack.c.l.b16 %v387
        %v468 = vunpack.c.l.b16 %v388
        %v469 = vunpack.c.l.b16 %v389
        %v470 = vunpack.c.l.b16 %v390
        %v471 = vunpack.c.l.b16 %v391
        %v472 = vunpack.c.l.b16 %v392
        %v473 = vunpack.c.l.b16 %v393
        %v474 = vunpack.c.l.b16 %v394
        %v475 = vunpack.c.l.b16 %v395
        %v476 = vunpack.c.l.b16 %v396
        %v477 = vunpack.c.l.b16 %v397
        %v478 = vunpack.c.l.b16 %v398
        %v479 = vunpack.c.l.b16 %v399
        %v480 = vpack.c.b16 %v465, %v464
        %v481 = vpack.c.b16 %v467, %v466
        %v482 = vpack.c.b16 %v469, %v468
        %v483 = vpack.c.b16 %v471, %v470
        %v484 = vpack.c.b16 %v473, %v472
        %v485 = vpack.c.b16 %v475, %v474
        %v486 = vpack.c.b16 %v477, %v476
        %v487 = vpack.c.b16 %v479, %v478
        %496 = vmatprep.subr.bf16.mxu0 0
        %497 = vmatpush1.bf16.msra.mxu0 %v480
        %498 = vmatprep.subr.bf16.mxu0 0
        %499 = vmatpush1.bf16.msra.mxu0 %v481
        %500 = vmatprep.subr.bf16.mxu0 0
        %501 = vmatpush1.bf16.msra.mxu0 %v482
        %502 = vmatprep.subr.bf16.mxu0 0
        %503 = vmatpush1.bf16.msra.mxu0 %v483
        %504 = vmatprep.subr.bf16.mxu0 0
        %505 = vmatpush1.bf16.msra.mxu0 %v484
        %506 = vmatprep.subr.bf16.mxu0 0
        %507 = vmatpush1.bf16.msra.mxu0 %v485
        %508 = vmatprep.subr.bf16.mxu0 0
        %509 = vmatpush1.bf16.msra.mxu0 %v486
        %510 = vmatprep.subr.bf16.mxu0 0
        %511 = vmatpush1.bf16.msra.mxu0 %v487
        %512 = vmatprep.subr.bf16.mxu0 0
        %513 = vmatpush1.bf16.msra.mxu0 0
        %514 = vmatprep.subr.bf16.mxu0 0
        %515 = vmatpush1.bf16.msra.mxu0 0
        %516 = vmatprep.subr.bf16.mxu0 0
        %517 = vmatpush1.bf16.msra.mxu0 0
        %518 = vmatprep.subr.bf16.mxu0 0
        %519 = vmatpush1.bf16.msra.mxu0 0
        %520 = vmatprep.subr.bf16.mxu0 0
        %521 = vmatpush1.bf16.msra.mxu0 0
        %522 = vmatprep.subr.bf16.mxu0 0
        %523 = vmatpush1.bf16.msra.mxu0 0
        %524 = vmatprep.subr.bf16.mxu0 0
        %525 = vmatpush1.bf16.msra.mxu0 0
        %526 = vmatprep.subr.bf16.mxu0 0
        %527 = vmatpush1.bf16.msra.mxu0 0
        %528 = vmatprep.mubr.bf16.mxu0 0
        %529 = vmatmul.mubr.bf16.gmra.mrb[0].mxu0 %v432
        %v530 = vpop.f32.mrb[0].mxu0
        %v531 = vadd.f32 0.0, %v530
        %v532 = vpop.f32.mrb[0].mxu0
        %v533 = vpop.f32.mrb[0].mxu0
        %v534 = vadd.f32 0.0, %v533
        %v535 = vpop.f32.mrb[0].mxu0
        %536 = vmatprep.mubr.bf16.mxu0 0
        %537 = vmatmul.mubr.bf16.gmra.mrb[0].mxu0 %v433
        %v538 = vpop.f32.mrb[0].mxu0
        %v539 = vadd.f32 0.0, %v538
        %v540 = vpop.f32.mrb[0].mxu0
        %v541 = vpop.f32.mrb[0].mxu0
        %v542 = vadd.f32 0.0, %v541
        %v543 = vpop.f32.mrb[0].mxu0
        %544 = vmatprep.mubr.bf16.mxu0 0
        %545 = vmatmul.mubr.bf16.gmra.mrb[0].mxu0 %v434
        %v546 = vpop.f32.mrb[0].mxu0
        %v547 = vadd.f32 0.0, %v546
        %v548 = vpop.f32.mrb[0].mxu0
        %v549 = vpop.f32.mrb[0].mxu0
        %v550 = vadd.f32 0.0, %v549
        %v551 = vpop.f32.mrb[0].mxu0
        %552 = vmatprep.mubr.bf16.mxu0 0
        %553 = vmatmul.mubr.bf16.gmra.mrb[0].mxu0 %v435
        %v554 = vpop.f32.mrb[0].mxu0
        %v555 = vadd.f32 0.0, %v554
        %v556 = vpop.f32.mrb[0].mxu0
        %v557 = vpop.f32.mrb[0].mxu0
        %v558 = vadd.f32 0.0, %v557
        %v559 = vpop.f32.mrb[0].mxu0
        %560 = vmatprep.mubr.bf16.mxu0 0
        %561 = vmatmul.mubr.bf16.gmra.mrb[0].mxu0 %v436
        %v562 = vpop.f32.mrb[0].mxu0
        %v563 = vadd.f32 0.0, %v562
        %v564 = vpop.f32.mrb[0].mxu0
        %v565 = vpop.f32.mrb[0].mxu0
        %v566 = vadd.f32 0.0, %v565
        %v567 = vpop.f32.mrb[0].mxu0
        %568 = vmatprep.mubr.bf16.mxu0 0
        %569 = vmatmul.mubr.bf16.gmra.mrb[0].mxu0 %v437
        %v570 = vpop.f32.mrb[0].mxu0
        %v571 = vadd.f32 0.0, %v570
        %v572 = vpop.f32.mrb[0].mxu0
        %v573 = vpop.f32.mrb[0].mxu0
        %v574 = vadd.f32 0.0, %v573
        %v575 = vpop.f32.mrb[0].mxu0
        %576 = vmatprep.mubr.bf16.mxu0 0
        %577 = vmatmul.mubr.bf16.gmra.mrb[0].mxu0 %v438
        %v578 = vpop.f32.mrb[0].mxu0
        %v579 = vadd.f32 0.0, %v578
        %v580 = vpop.f32.mrb[0].mxu0
        %v581 = vpop.f32.mrb[0].mxu0
        %v582 = vadd.f32 0.0, %v581
        %v583 = vpop.f32.mrb[0].mxu0
        %584 = vmatprep.mubr.bf16.mxu0 0
        %585 = vmatmul.mubr.bf16.gmra.mrb[0].mxu0 %v439
        %v586 = vpop.f32.mrb[0].mxu0
        %v587 = vadd.f32 0.0, %v586
        %v588 = vpop.f32.mrb[0].mxu0
        %v589 = vpop.f32.mrb[0].mxu0
        %v590 = vadd.f32 0.0, %v589
        %v591 = vpop.f32.mrb[0].mxu0
        %592 = vdwg.mxu0
        %v593 = vadd.f32 %v352, %v531
        %v594 = vadd.f32 %v353, %v534
        %v595 = vadd.f32 %v354, %v539
        %v596 = vadd.f32 %v355, %v542
        %v597 = vadd.f32 %v356, %v547
        %v598 = vadd.f32 %v357, %v550
        %v599 = vadd.f32 %v358, %v555
        %v600 = vadd.f32 %v359, %v558
        %v601 = vadd.f32 %v360, %v563
        %v602 = vadd.f32 %v361, %v566
        %v603 = vadd.f32 %v362, %v571
        %v604 = vadd.f32 %v363, %v574
        %v605 = vadd.f32 %v364, %v579
        %v606 = vadd.f32 %v365, %v582
        %v607 = vadd.f32 %v366, %v587
        %v608 = vadd.f32 %v367, %v590
        %609 = vst [vmem:[#allocation2] sm:$0xff] %v593
        %610 = vst [vmem:[#allocation2 + $0x8] sm:$0xff] %v594
        %611 = vst [vmem:[#allocation2 + $0x10] sm:$0xff] %v595
        %612 = vst [vmem:[#allocation2 + $0x18] sm:$0xff] %v596
        %613 = vst [vmem:[#allocation2 + $0x20] sm:$0xff] %v597
        %614 = vst [vmem:[#allocation2 + $0x28] sm:$0xff] %v598
        %615 = vst [vmem:[#allocation2 + $0x30] sm:$0xff] %v599
        %616 = vst [vmem:[#allocation2 + $0x38] sm:$0xff] %v600
        %617 = vst [vmem:[#allocation2 + $0x40] sm:$0xff] %v601
        %618 = vst [vmem:[#allocation2 + $0x48] sm:$0xff] %v602
        %619 = vst [vmem:[#allocation2 + $0x50] sm:$0xff] %v603
        %620 = vst [vmem:[#allocation2 + $0x58] sm:$0xff] %v604
        %621 = vst [vmem:[#allocation2 + $0x60] sm:$0xff] %v605
        %622 = vst [vmem:[#allocation2 + $0x68] sm:$0xff] %v606
        %623 = vst [vmem:[#allocation2 + $0x70] sm:$0xff] %v607
        %624 = vst [vmem:[#allocation2 + $0x78] sm:$0xff] %v608
        %p625 = scmp.eq.s32.totalorder %s31, 1
        // Predicated region
        $region61: #{tpu_custom_call.1} parent=39 // pred_check
          %p626 = pneg %p625
        $region62: #{tpu_custom_call.1} parent=39 // pred_check_branch
          %628 = sbr.rel (%p626) target = $region64
        $region63: #{tpu_custom_call.1} parent=39 // pred_region
          %v629 = vld [vmem:[#allocation2] sm:$0xff]
          %v630 = vld [vmem:[#allocation2 + $0x8] sm:$0xff]
          %v631 = vld [vmem:[#allocation2 + $0x10] sm:$0xff]
          %v632 = vld [vmem:[#allocation2 + $0x18] sm:$0xff]
          %v633 = vld [vmem:[#allocation2 + $0x20] sm:$0xff]
          %v634 = vld [vmem:[#allocation2 + $0x28] sm:$0xff]
          %v635 = vld [vmem:[#allocation2 + $0x30] sm:$0xff]
          %v636 = vld [vmem:[#allocation2 + $0x38] sm:$0xff]
          %v637 = vld [vmem:[#allocation2 + $0x40] sm:$0xff]
          %v638 = vld [vmem:[#allocation2 + $0x48] sm:$0xff]
          %v639 = vld [vmem:[#allocation2 + $0x50] sm:$0xff]
          %v640 = vld [vmem:[#allocation2 + $0x58] sm:$0xff]
          %v641 = vld [vmem:[#allocation2 + $0x60] sm:$0xff]
          %v642 = vld [vmem:[#allocation2 + $0x68] sm:$0xff]
          %v643 = vld [vmem:[#allocation2 + $0x70] sm:$0xff]
          %v644 = vld [vmem:[#allocation2 + $0x78] sm:$0xff]
          %v645 = vpack.c.bf16 %v630, %v629
          %v646 = vpack.c.bf16 %v632, %v631
          %v647 = vpack.c.bf16 %v634, %v633
          %v648 = vpack.c.bf16 %v636, %v635
          %v649 = vpack.c.bf16 %v638, %v637
          %v650 = vpack.c.bf16 %v640, %v639
          %v651 = vpack.c.bf16 %v642, %v641
          %v652 = vpack.c.bf16 %v644, %v643
          %v653 = vld [vmem:[#allocation8] sm:$0xf]
          %v654 = vld [vmem:[#allocation8 + $0x4] sm:$0xf]
          %v655 = vld [vmem:[#allocation8 + $0x8] sm:$0xf]
          %v656 = vld [vmem:[#allocation8 + $0xc] sm:$0xf]
          %v657 = vld [vmem:[#allocation8 + $0x10] sm:$0xf]
          %v658 = vld [vmem:[#allocation8 + $0x14] sm:$0xf]
          %v659 = vld [vmem:[#allocation8 + $0x18] sm:$0xf]
          %v660 = vld [vmem:[#allocation8 + $0x1c] sm:$0xf]
          %v661 = vld [vmem:[#allocation8 + $0x20] sm:$0xf]
          %v662 = vld [vmem:[#allocation8 + $0x24] sm:$0xf]
          %v663 = vld [vmem:[#allocation8 + $0x28] sm:$0xf]
          %v664 = vld [vmem:[#allocation8 + $0x2c] sm:$0xf]
          %v665 = vld [vmem:[#allocation8 + $0x30] sm:$0xf]
          %v666 = vld [vmem:[#allocation8 + $0x34] sm:$0xf]
          %v667 = vld [vmem:[#allocation8 + $0x38] sm:$0xf]
          %v668 = vld [vmem:[#allocation8 + $0x3c] sm:$0xf]
          %v669 = vld [vmem:[%s3] sm:$0x1]
          %v671 = vlaneseq
          %v672 = vshrl.u32 %v671, 7
          %v673 = vsub.s32 0, %v672
          %v674 = vrot.slane %v669, %v673
          %v692 = vunpack.c.l.b16 %v653
          %v693 = vunpack.c.l.b16 %v654
          %v694 = vunpack.c.l.b16 %v655
          %v695 = vunpack.c.l.b16 %v656
          %v696 = vunpack.c.l.b16 %v657
          %v697 = vunpack.c.l.b16 %v658
          %v698 = vunpack.c.l.b16 %v659
          %v699 = vunpack.c.l.b16 %v660
          %v700 = vunpack.c.l.b16 %v661
          %v701 = vunpack.c.l.b16 %v662
          %v702 = vunpack.c.l.b16 %v663
          %v703 = vunpack.c.l.b16 %v664
          %v704 = vunpack.c.l.b16 %v665
          %v705 = vunpack.c.l.b16 %v666
          %v706 = vunpack.c.l.b16 %v667
          %v707 = vunpack.c.l.b16 %v668
          %v708 = vpack.c.b16 %v693, %v692
          %v709 = vpack.c.b16 %v695, %v694
          %v710 = vpack.c.b16 %v697, %v696
          %v711 = vpack.c.b16 %v699, %v698
          %v712 = vpack.c.b16 %v701, %v700
          %v713 = vpack.c.b16 %v703, %v702
          %v714 = vpack.c.b16 %v705, %v704
          %v715 = vpack.c.b16 %v707, %v706
          %724 = vmatprep.subr.bf16.mxu0 0
          %725 = vmatpush1.bf16.msra.mxu0 %v708
          %726 = vmatprep.subr.bf16.mxu0 0
          %727 = vmatpush1.bf16.msra.mxu0 %v709
          %728 = vmatprep.subr.bf16.mxu0 0
          %729 = vmatpush1.bf16.msra.mxu0 %v710
          %730 = vmatprep.subr.bf16.mxu0 0
          %731 = vmatpush1.bf16.msra.mxu0 %v711
          %732 = vmatprep.subr.bf16.mxu0 0
          %733 = vmatpush1.bf16.msra.mxu0 %v712
          %734 = vmatprep.subr.bf16.mxu0 0
          %735 = vmatpush1.bf16.msra.mxu0 %v713
          %736 = vmatprep.subr.bf16.mxu0 0
          %737 = vmatpush1.bf16.msra.mxu0 %v714
          %738 = vmatprep.subr.bf16.mxu0 0
          %739 = vmatpush1.bf16.msra.mxu0 %v715
          %740 = vmatprep.subr.bf16.mxu0 0
          %741 = vmatpush1.bf16.msra.mxu0 0
          %742 = vmatprep.subr.bf16.mxu0 0
          %743 = vmatpush1.bf16.msra.mxu0 0
          %744 = vmatprep.subr.bf16.mxu0 0
          %745 = vmatpush1.bf16.msra.mxu0 0
          %746 = vmatprep.subr.bf16.mxu0 0
          %747 = vmatpush1.bf16.msra.mxu0 0
          %748 = vmatprep.subr.bf16.mxu0 0
          %749 = vmatpush1.bf16.msra.mxu0 0
          %750 = vmatprep.subr.bf16.mxu0 0
          %751 = vmatpush1.bf16.msra.mxu0 0
          %752 = vmatprep.subr.bf16.mxu0 0
          %753 = vmatpush1.bf16.msra.mxu0 0
          %754 = vmatprep.subr.bf16.mxu0 0
          %755 = vmatpush1.bf16.msra.mxu0 0
          %756 = vmatprep.mubr.bf16.mxu0 0
          %757 = vmatmul.mubr.bf16.gmra.mrb[0].mxu0 %v645
          %v758 = vpop.f32.mrb[0].mxu0
          %v759 = vadd.f32 %v674, %v758
          %v760 = vpop.f32.mrb[0].mxu0
          %v761 = vpop.f32.mrb[0].mxu0
          %v762 = vadd.f32 %v674, %v761
          %v763 = vpop.f32.mrb[0].mxu0
          %764 = vmatprep.mubr.bf16.mxu0 0
          %765 = vmatmul.mubr.bf16.gmra.mrb[0].mxu0 %v646
          %v766 = vpop.f32.mrb[0].mxu0
          %v767 = vadd.f32 %v674, %v766
          %v768 = vpop.f32.mrb[0].mxu0
          %v769 = vpop.f32.mrb[0].mxu0
          %v770 = vadd.f32 %v674, %v769
          %v771 = vpop.f32.mrb[0].mxu0
          %772 = vmatprep.mubr.bf16.mxu0 0
          %773 = vmatmul.mubr.bf16.gmra.mrb[0].mxu0 %v647
          %v774 = vpop.f32.mrb[0].mxu0
          %v775 = vadd.f32 %v674, %v774
          %v776 = vpop.f32.mrb[0].mxu0
          %v777 = vpop.f32.mrb[0].mxu0
          %v778 = vadd.f32 %v674, %v777
          %v779 = vpop.f32.mrb[0].mxu0
          %780 = vmatprep.mubr.bf16.mxu0 0
          %781 = vmatmul.mubr.bf16.gmra.mrb[0].mxu0 %v648
          %v782 = vpop.f32.mrb[0].mxu0
          %v783 = vadd.f32 %v674, %v782
          %v784 = vpop.f32.mrb[0].mxu0
          %v785 = vpop.f32.mrb[0].mxu0
          %v786 = vadd.f32 %v674, %v785
          %v787 = vpop.f32.mrb[0].mxu0
          %788 = vmatprep.mubr.bf16.mxu0 0
          %789 = vmatmul.mubr.bf16.gmra.mrb[0].mxu0 %v649
          %v790 = vpop.f32.mrb[0].mxu0
          %v791 = vadd.f32 %v674, %v790
          %v792 = vpop.f32.mrb[0].mxu0
          %v793 = vpop.f32.mrb[0].mxu0
          %v794 = vadd.f32 %v674, %v793
          %v795 = vpop.f32.mrb[0].mxu0
          %796 = vmatprep.mubr.bf16.mxu0 0
          %797 = vmatmul.mubr.bf16.gmra.mrb[0].mxu0 %v650
          %v798 = vpop.f32.mrb[0].mxu0
          %v799 = vadd.f32 %v674, %v798
          %v800 = vpop.f32.mrb[0].mxu0
          %v801 = vpop.f32.mrb[0].mxu0
          %v802 = vadd.f32 %v674, %v801
          %v803 = vpop.f32.mrb[0].mxu0
          %804 = vmatprep.mubr.bf16.mxu0 0
          %805 = vmatmul.mubr.bf16.gmra.mrb[0].mxu0 %v651
          %v806 = vpop.f32.mrb[0].mxu0
          %v807 = vadd.f32 %v674, %v806
          %v808 = vpop.f32.mrb[0].mxu0
          %v809 = vpop.f32.mrb[0].mxu0
          %v810 = vadd.f32 %v674, %v809
          %v811 = vpop.f32.mrb[0].mxu0
          %812 = vmatprep.mubr.bf16.mxu0 0
          %813 = vmatmul.mubr.bf16.gmra.mrb[0].mxu0 %v652
          %v814 = vpop.f32.mrb[0].mxu0
          %v815 = vadd.f32 %v674, %v814
          %v816 = vpop.f32.mrb[0].mxu0
          %v817 = vpop.f32.mrb[0].mxu0
          %v818 = vadd.f32 %v674, %v817
          %v819 = vpop.f32.mrb[0].mxu0
          %820 = vdwg.mxu0
          %v821 = vmax.f32 %v759, 0.0
          %v822 = vmax.f32 %v762, 0.0
          %v823 = vmax.f32 %v767, 0.0
          %v824 = vmax.f32 %v770, 0.0
          %v825 = vmax.f32 %v775, 0.0
          %v826 = vmax.f32 %v778, 0.0
          %v827 = vmax.f32 %v783, 0.0
          %v828 = vmax.f32 %v786, 0.0
          %v829 = vmax.f32 %v791, 0.0
          %v830 = vmax.f32 %v794, 0.0
          %v831 = vmax.f32 %v799, 0.0
          %v832 = vmax.f32 %v802, 0.0
          %v833 = vmax.f32 %v807, 0.0
          %v834 = vmax.f32 %v810, 0.0
          %v835 = vmax.f32 %v815, 0.0
          %v836 = vmax.f32 %v818, 0.0
          %v837 = vpack.c.bf16 %v822, %v821
          %v838 = vpack.c.bf16 %v824, %v823
          %v839 = vpack.c.bf16 %v826, %v825
          %v840 = vpack.c.bf16 %v828, %v827
          %v841 = vpack.c.bf16 %v830, %v829
          %v842 = vpack.c.bf16 %v832, %v831
          %v843 = vpack.c.bf16 %v834, %v833
          %v844 = vpack.c.bf16 %v836, %v835
          %v845 = vld [vmem:[#allocation9] sm:$0xf]
          %v846 = vld [vmem:[#allocation9 + $0x4] sm:$0xf]
          %v847 = vld [vmem:[#allocation9 + $0x8] sm:$0xf]
          %v848 = vld [vmem:[#allocation9 + $0xc] sm:$0xf]
          %v849 = vld [vmem:[#allocation9 + $0x10] sm:$0xf]
          %v850 = vld [vmem:[#allocation9 + $0x14] sm:$0xf]
          %v851 = vld [vmem:[#allocation9 + $0x18] sm:$0xf]
          %v852 = vld [vmem:[#allocation9 + $0x1c] sm:$0xf]
          %v853 = vld [vmem:[#allocation9 + $0x20] sm:$0xf]
          %v854 = vld [vmem:[#allocation9 + $0x24] sm:$0xf]
          %v855 = vld [vmem:[#allocation9 + $0x28] sm:$0xf]
          %v856 = vld [vmem:[#allocation9 + $0x2c] sm:$0xf]
          %v857 = vld [vmem:[#allocation9 + $0x30] sm:$0xf]
          %v858 = vld [vmem:[#allocation9 + $0x34] sm:$0xf]
          %v859 = vld [vmem:[#allocation9 + $0x38] sm:$0xf]
          %v860 = vld [vmem:[#allocation9 + $0x3c] sm:$0xf]
          %v877 = vunpack.c.l.b16 %v845
          %v878 = vunpack.c.l.b16 %v846
          %v879 = vunpack.c.l.b16 %v847
          %v880 = vunpack.c.l.b16 %v848
          %v881 = vunpack.c.l.b16 %v849
          %v882 = vunpack.c.l.b16 %v850
          %v883 = vunpack.c.l.b16 %v851
          %v884 = vunpack.c.l.b16 %v852
          %v885 = vunpack.c.l.b16 %v853
          %v886 = vunpack.c.l.b16 %v854
          %v887 = vunpack.c.l.b16 %v855
          %v888 = vunpack.c.l.b16 %v856
          %v889 = vunpack.c.l.b16 %v857
          %v890 = vunpack.c.l.b16 %v858
          %v891 = vunpack.c.l.b16 %v859
          %v892 = vunpack.c.l.b16 %v860
          %v893 = vpack.c.b16 %v878, %v877
          %v894 = vpack.c.b16 %v880, %v879
          %v895 = vpack.c.b16 %v882, %v881
          %v896 = vpack.c.b16 %v884, %v883
          %v897 = vpack.c.b16 %v886, %v885
          %v898 = vpack.c.b16 %v888, %v887
          %v899 = vpack.c.b16 %v890, %v889
          %v900 = vpack.c.b16 %v892, %v891
          %909 = vmatprep.subr.bf16.mxu0 0
          %910 = vmatpush1.bf16.msra.mxu0 %v893
          %911 = vmatprep.subr.bf16.mxu0 0
          %912 = vmatpush1.bf16.msra.mxu0 %v894
          %913 = vmatprep.subr.bf16.mxu0 0
          %914 = vmatpush1.bf16.msra.mxu0 %v895
          %915 = vmatprep.subr.bf16.mxu0 0
          %916 = vmatpush1.bf16.msra.mxu0 %v896
          %917 = vmatprep.subr.bf16.mxu0 0
          %918 = vmatpush1.bf16.msra.mxu0 %v897
          %919 = vmatprep.subr.bf16.mxu0 0
          %920 = vmatpush1.bf16.msra.mxu0 %v898
          %921 = vmatprep.subr.bf16.mxu0 0
          %922 = vmatpush1.bf16.msra.mxu0 %v899
          %923 = vmatprep.subr.bf16.mxu0 0
          %924 = vmatpush1.bf16.msra.mxu0 %v900
          %925 = vmatprep.subr.bf16.mxu0 0
          %926 = vmatpush1.bf16.msra.mxu0 0
          %927 = vmatprep.subr.bf16.mxu0 0
          %928 = vmatpush1.bf16.msra.mxu0 0
          %929 = vmatprep.subr.bf16.mxu0 0
          %930 = vmatpush1.bf16.msra.mxu0 0
          %931 = vmatprep.subr.bf16.mxu0 0
          %932 = vmatpush1.bf16.msra.mxu0 0
          %933 = vmatprep.subr.bf16.mxu0 0
          %934 = vmatpush1.bf16.msra.mxu0 0
          %935 = vmatprep.subr.bf16.mxu0 0
          %936 = vmatpush1.bf16.msra.mxu0 0
          %937 = vmatprep.subr.bf16.mxu0 0
          %938 = vmatpush1.bf16.msra.mxu0 0
          %939 = vmatprep.subr.bf16.mxu0 0
          %940 = vmatpush1.bf16.msra.mxu0 0
          %941 = vmatprep.mubr.bf16.mxu0 0
          %942 = vmatmul.mubr.bf16.gmra.mrb[0].mxu0 %v837
          %v943 = vpop.f32.mrb[0].mxu0
          %v944 = vadd.f32 0.0, %v943
          %v945 = vpop.f32.mrb[0].mxu0
          %v946 = vpop.f32.mrb[0].mxu0
          %v947 = vadd.f32 0.0, %v946
          %v948 = vpop.f32.mrb[0].mxu0
          %949 = vmatprep.mubr.bf16.mxu0 0
          %950 = vmatmul.mubr.bf16.gmra.mrb[0].mxu0 %v838
          %v951 = vpop.f32.mrb[0].mxu0
          %v952 = vadd.f32 0.0, %v951
          %v953 = vpop.f32.mrb[0].mxu0
          %v954 = vpop.f32.mrb[0].mxu0
          %v955 = vadd.f32 0.0, %v954
          %v956 = vpop.f32.mrb[0].mxu0
          %957 = vmatprep.mubr.bf16.mxu0 0
          %958 = vmatmul.mubr.bf16.gmra.mrb[0].mxu0 %v839
          %v959 = vpop.f32.mrb[0].mxu0
          %v960 = vadd.f32 0.0, %v959
          %v961 = vpop.f32.mrb[0].mxu0
          %v962 = vpop.f32.mrb[0].mxu0
          %v963 = vadd.f32 0.0, %v962
          %v964 = vpop.f32.mrb[0].mxu0
          %965 = vmatprep.mubr.bf16.mxu0 0
          %966 = vmatmul.mubr.bf16.gmra.mrb[0].mxu0 %v840
          %v967 = vpop.f32.mrb[0].mxu0
          %v968 = vadd.f32 0.0, %v967
          %v969 = vpop.f32.mrb[0].mxu0
          %v970 = vpop.f32.mrb[0].mxu0
          %v971 = vadd.f32 0.0, %v970
          %v972 = vpop.f32.mrb[0].mxu0
          %973 = vmatprep.mubr.bf16.mxu0 0
          %974 = vmatmul.mubr.bf16.gmra.mrb[0].mxu0 %v841
          %v975 = vpop.f32.mrb[0].mxu0
          %v976 = vadd.f32 0.0, %v975
          %v977 = vpop.f32.mrb[0].mxu0
          %v978 = vpop.f32.mrb[0].mxu0
          %v979 = vadd.f32 0.0, %v978
          %v980 = vpop.f32.mrb[0].mxu0
          %981 = vmatprep.mubr.bf16.mxu0 0
          %982 = vmatmul.mubr.bf16.gmra.mrb[0].mxu0 %v842
          %v983 = vpop.f32.mrb[0].mxu0
          %v984 = vadd.f32 0.0, %v983
          %v985 = vpop.f32.mrb[0].mxu0
          %v986 = vpop.f32.mrb[0].mxu0
          %v987 = vadd.f32 0.0, %v986
          %v988 = vpop.f32.mrb[0].mxu0
          %989 = vmatprep.mubr.bf16.mxu0 0
          %990 = vmatmul.mubr.bf16.gmra.mrb[0].mxu0 %v843
          %v991 = vpop.f32.mrb[0].mxu0
          %v992 = vadd.f32 0.0, %v991
          %v993 = vpop.f32.mrb[0].mxu0
          %v994 = vpop.f32.mrb[0].mxu0
          %v995 = vadd.f32 0.0, %v994
          %v996 = vpop.f32.mrb[0].mxu0
          %997 = vmatprep.mubr.bf16.mxu0 0
          %998 = vmatmul.mubr.bf16.gmra.mrb[0].mxu0 %v844
          %v999 = vpop.f32.mrb[0].mxu0
          %v1000 = vadd.f32 0.0, %v999
          %v1001 = vpop.f32.mrb[0].mxu0
          %v1002 = vpop.f32.mrb[0].mxu0
          %v1003 = vadd.f32 0.0, %v1002
          %v1004 = vpop.f32.mrb[0].mxu0
          %1005 = vdwg.mxu0
          %v1006 = vpack.c.bf16 %v947, %v944
          %v1007 = vpack.c.bf16 %v955, %v952
          %v1008 = vpack.c.bf16 %v963, %v960
          %v1009 = vpack.c.bf16 %v971, %v968
          %v1010 = vpack.c.bf16 %v979, %v976
          %v1011 = vpack.c.bf16 %v987, %v984
          %v1012 = vpack.c.bf16 %v995, %v992
          %v1013 = vpack.c.bf16 %v1003, %v1000
          %v1022 = vunpack.c.l.b16 %v1006
          %v1023 = vunpack.c.h.b16 %v1006
          %v1024 = vunpack.c.l.b16 %v1007
          %v1025 = vunpack.c.h.b16 %v1007
          %v1026 = vunpack.c.l.b16 %v1008
          %v1027 = vunpack.c.h.b16 %v1008
          %v1028 = vunpack.c.l.b16 %v1009
          %v1029 = vunpack.c.h.b16 %v1009
          %v1030 = vunpack.c.l.b16 %v1010
          %v1031 = vunpack.c.h.b16 %v1010
          %v1032 = vunpack.c.l.b16 %v1011
          %v1033 = vunpack.c.h.b16 %v1011
          %v1034 = vunpack.c.l.b16 %v1012
          %v1035 = vunpack.c.h.b16 %v1012
          %v1036 = vunpack.c.l.b16 %v1013
          %v1037 = vunpack.c.h.b16 %v1013
          %v1038 = vpack.c.b16 %v1022, %v1022
          %v1039 = vpack.c.b16 %v1023, %v1023
          %v1040 = vpack.c.b16 %v1024, %v1024
          %v1041 = vpack.c.b16 %v1025, %v1025
          %v1042 = vpack.c.b16 %v1026, %v1026
          %v1043 = vpack.c.b16 %v1027, %v1027
          %v1044 = vpack.c.b16 %v1028, %v1028
          %v1045 = vpack.c.b16 %v1029, %v1029
          %v1046 = vpack.c.b16 %v1030, %v1030
          %v1047 = vpack.c.b16 %v1031, %v1031
          %v1048 = vpack.c.b16 %v1032, %v1032
          %v1049 = vpack.c.b16 %v1033, %v1033
          %v1050 = vpack.c.b16 %v1034, %v1034
          %v1051 = vpack.c.b16 %v1035, %v1035
          %v1052 = vpack.c.b16 %v1036, %v1036
          %v1053 = vpack.c.b16 %v1037, %v1037
          %1070 = vst [vmem:[%s327] sm:$0xf] %v1038
          %1071 = vst [vmem:[%s327 + $0x4] sm:$0xf] %v1039
          %1072 = vst [vmem:[%s327 + $0x8] sm:$0xf] %v1040
          %1073 = vst [vmem:[%s327 + $0xc] sm:$0xf] %v1041
          %1074 = vst [vmem:[%s327 + $0x10] sm:$0xf] %v1042
          %1075 = vst [vmem:[%s327 + $0x14] sm:$0xf] %v1043
          %1076 = vst [vmem:[%s327 + $0x18] sm:$0xf] %v1044
          %1077 = vst [vmem:[%s327 + $0x1c] sm:$0xf] %v1045
          %1078 = vst [vmem:[%s327 + $0x20] sm:$0xf] %v1046
          %1079 = vst [vmem:[%s327 + $0x24] sm:$0xf] %v1047
          %1080 = vst [vmem:[%s327 + $0x28] sm:$0xf] %v1048
          %1081 = vst [vmem:[%s327 + $0x2c] sm:$0xf] %v1049
          %1082 = vst [vmem:[%s327 + $0x30] sm:$0xf] %v1050
          %1083 = vst [vmem:[%s327 + $0x34] sm:$0xf] %v1051
          %1084 = vst [vmem:[%s327 + $0x38] sm:$0xf] %v1052
          %1085 = vst [vmem:[%s327 + $0x3c] sm:$0xf] %v1053
        $region64: #{tpu_custom_call.1} parent=39 // pred_fallthru
          _
        %s1086 = sand.u32 %s163, 1
        %s1087 = scalar_lea.sflag [#allocation5], %s1086
        %s1088 = sand.u32 %s163, 1
        %s1089 = smul.addr %s1088, 64
        %s1090 = scalar_lea.vmem [#allocation11], %s1089
        // Predicated region
        $region65: #{tpu_custom_call.1} parent=39 // pred_check
          %p1091 = pneg %p173
        $region66: #{tpu_custom_call.1} parent=39 // pred_check_branch
          %1093 = sbr.rel (%p1091) target = $region68
        $region67: #{tpu_custom_call.1} parent=39 // pred_region
          %s1094 = smul.u32 16, %s30
          %s1096 = ssub.s32 1024, 1024
          %1097 = vsyncadd %s1087, %s1096
          %s1098 = smul.addr %s1094, 64
          %s1099 = scalar_lea.hbm %s5, %s1098
          %s1100 = sshll.u32 %s1090, 4
          %s1101 = int_to_ptr.vmem [resolvable:$true] %s1100
          %1106 = dma.vmem_to_hbm [thread:$0]  %s1101, 1024, %s1099, %s1087, 64, 64, 4
        $region68: #{tpu_custom_call.1} parent=39 // pred_fallthru
          _
      $region40: #{tpu_custom_call.1} parent=5 // pred_fallthru
        _
      %p1107 = scmp.le.s32.totalorder 2, %s21
      // Predicated region
      $region69: #{tpu_custom_call.1} parent=5 // pred_check
        %p1108 = pneg %p1107
      $region70: #{tpu_custom_call.1} parent=5 // pred_check_branch
        %1110 = sbr.rel (%p1108) target = $region72
      $region71: #{tpu_custom_call.1} parent=5 // pred_region
        %s1111 = ssub.s32 %s21, 2
        // Predicated region
        $region73: #{tpu_custom_call.1} parent=71 // pred_check
          %p1112 = pneg %p179
        $region74: #{tpu_custom_call.1} parent=71 // pred_check_branch
          %1114 = sbr.rel (%p1112) target = $region76
        $region75: #{tpu_custom_call.1} parent=71 // pred_region
          %s1115 = sand.u32 %s164, 1
          %s1116 = scalar_lea.sflag [#allocation5], %s1115
          %s1117 = sand.u32 %s164, 1
          %s1118 = smul.addr %s1117, 64
          %s1119 = scalar_lea.vmem [#allocation11], %s1118
          %1120 = dma.done %s1116, 1024
        $region76: #{tpu_custom_call.1} parent=71 // pred_fallthru
          _
      $region72: #{tpu_custom_call.1} parent=5 // pred_fallthru
        _
    $region6: #{tpu_custom_call.1} parent=1 // loop_footer
      %s25 = sadd.s32 1, %s21
    $region7: #{tpu_custom_call.1} parent=1 // loop_footer_branch
      %20 = sbr.rel target = $region3
    $region8: #{tpu_custom_call.1} parent=1 // loop_exit
      _
    %1121 = vsyncpa [#allocation4], 1
    %s1122 = scalar_lea.sflag [#allocation4], 1
    %1123 = vsyncpa %s1122, 1
    %1124 = vsyncpa [#allocation7], 1
    %s1125 = scalar_lea.sflag [#allocation7], 1
    %1126 = vsyncpa %s1125, 1
    %1127 = vsyncpa [#allocation10], 1
    %1128 = vsyncpa [#allocation5], 1
    %s1129 = scalar_lea.sflag [#allocation5], 1
    %1130 = vsyncpa %s1129, 1

</llo_original>
